<compile_context>
chip_gen: v7x
topology: tpu7x:2x2x1
jax: 0.10.0
libtpu: 0.0.40
codegen_flags: <defaults>
</compile_context>

<pallas_src>
import functools

import jax
import jax.numpy as jnp
from jax.experimental import pallas as pl
from jax.experimental.pallas import tpu as pltpu

LEAK_SLOPE = 0.1      # activation = nn.LeakyReLU(0.1)
BN_EPS = 1e-5         # nn.BatchNorm1d default eps


# ----------------------------- kernel helpers -----------------------------

def _leaky_relu(x):
    return jnp.where(x > 0, x, LEAK_SLOPE * x)


def _batchnorm(x, gamma, beta):
    # BatchNorm1d, training mode, biased batch statistics.
    # var = E[x^2] - E[x]^2 (one pass); fold gamma into the rsqrt scale so the
    # full-tile work is a single fused multiply-add.
    mean = jnp.mean(x, axis=0, keepdims=True)
    var = jnp.maximum(jnp.mean(x * x, axis=0, keepdims=True) - mean * mean, 0.0)
    scale = jax.lax.rsqrt(var + BN_EPS) * gamma          # (1, feat) vector op
    return (x - mean) * scale + beta


def _softmax_axis1(x):
    m = jnp.max(x, axis=1, keepdims=True)
    e = jnp.exp(x - m)
    # approx reciprocal -> EUP slot (otherwise idle), instead of VALU divide.
    return e * pl.reciprocal(jnp.sum(e, axis=1, keepdims=True), approx=True)


# ------------------------------- the kernel -------------------------------

def _generator_kernel(latent_dim, n_neurons, output_dim, par_dim,
                      x_ref, w_ref, v_ref, out_ref):
    """Whole Generator forward, VMEM-resident.

    w_ref : (n_weights, max_in, max_out) bf16, zero-padded, consumption order:
            [w_in, hidden..., w_state, w_p1, w_p2, w_demloc]
    v_ref : (n_vecs, max_feat) f32, zero-padded, consumption order:
            [b_in, (b, gamma, beta) per hidden, b_p1, g_p1, be_p1,
             b_p2, g_p2, be_p2]
    """
    w_idx = [0]
    v_idx = [0]

    def take_w(fan_in, fan_out):
        i = w_idx[0]
        w_idx[0] += 1
        return w_ref[i, :fan_in, :fan_out]          # static slice, bf16

    def take_v(feat):
        r = v_idx[0]
        v_idx[0] += 1
        return v_ref[r:r + 1, :feat]                # (1, feat), f32

    def bdot(a, w):
        # bf16 MXU operands, f32 accumulation.
        return jnp.dot(a.astype(jnp.bfloat16), w,
                       preferred_element_type=jnp.float32)

    x = x_ref[...]

    # in_layer + activation
    n0 = n_neurons[0]
    h = _leaky_relu(bdot(x, take_w(latent_dim, n0)) + take_v(n0))

    # hidden layers: Linear -> activation -> BatchNorm1d
    for i in range(len(n_neurons) - 1):
        fi, fo = n_neurons[i], n_neurons[i + 1]
        h = _leaky_relu(bdot(h, take_w(fi, fo)) + take_v(fo))
        gamma = take_v(fo)
        beta = take_v(fo)
        h = _batchnorm(h, gamma, beta)

    n_last, n_pen = n_neurons[-1], n_neurons[-2]
    h_bf = h.astype(jnp.bfloat16)                   # cast once, reuse twice

    # state head (no bias)
    state = jnp.dot(h_bf, take_w(n_last, output_dim),
                    preferred_element_type=jnp.float32)

    # leak branch
    par = _leaky_relu(jnp.dot(h_bf, take_w(n_last, n_pen),
                              preferred_element_type=jnp.float32)
                      + take_v(n_pen))
    par = _batchnorm(par, take_v(n_pen), take_v(n_pen))
    par = _leaky_relu(bdot(par, take_w(n_pen, n_pen)) + take_v(n_pen))
    par = _batchnorm(par, take_v(n_pen), take_v(n_pen))

    # fused [demand | location] head: one matmul instead of two
    dl = bdot(par, take_w(n_pen, par_dim))          # (B, par_dim)
    dem = dl[:, 0:1]
    loc = _softmax_axis1(dl[:, 1:par_dim])

    # torch.cat([state, leak_demand, leak_location], dim=1)
    # -> single contiguous full-width store (no masked partial stores).
    out_ref[...] = jnp.concatenate([state, dem, loc], axis=1)


# ------------------------------ param packing ------------------------------

def _pack_params(params, n_neurons):
    """Pack all parameters into two arrays (cuts DMA descriptor count)."""
    # Weights, in kernel consumption order.  w_dem / w_loc fused -> one head.
    w_list = [params["w_in"]]
    for (w, _, _, _) in params["hidden"]:
        w_list.append(w)
    w_demloc = jnp.concatenate([params["w_dem"], params["w_loc"]], axis=1)
    w_list += [params["w_state"], params["w_p1"], params["w_p2"], w_demloc]

    max_in = max(w.shape[0] for w in w_list)
    max_out = max(w.shape[1] for w in w_list)
    w_all = jnp.stack([
        jnp.pad(w, ((0, max_in - w.shape[0]), (0, max_out - w.shape[1])))
        for w in w_list
    ]).astype(jnp.bfloat16)                          # bf16 MXU operands

    # Bias / gamma / beta row-vectors, in kernel consumption order (f32: VPU).
    v_list = [params["b_in"]]
    for (_, b, g, be) in params["hidden"]:
        v_list += [b, g, be]
    v_list += [params["b_p1"], params["g_p1"], params["be_p1"],
               params["b_p2"], params["g_p2"], params["be_p2"]]
    max_feat = max(v.shape[1] for v in v_list)
    v_all = jnp.concatenate([
        jnp.pad(v, ((0, 0), (0, max_feat - v.shape[1]))) for v in v_list
    ], axis=0).astype(jnp.float32)

    return w_all, v_all


# ------------------------------- JAX wrapper -------------------------------

def generator_forward(x, params, *, latent_dim, n_neurons, output_dim, par_dim):
    w_all, v_all = _pack_params(params, n_neurons)

    batch = x.shape[0]
    total_out = output_dim + par_dim                 # output_dim + 1 + (par_dim-1)

    kernel = functools.partial(_generator_kernel, latent_dim, tuple(n_neurons),
                               output_dim, par_dim)
    vmem = pl.BlockSpec(memory_space=pltpu.MemorySpace.VMEM)

    # Accurate (tiny) cost estimate so XLA schedules this without pessimism.
    dims = [(latent_dim, n_neurons[0])]
    dims += [(n_neurons[i], n_neurons[i + 1]) for i in range(len(n_neurons) - 1)]
    dims += [(n_neurons[-1], output_dim), (n_neurons[-1], n_neurons[-2]),
             (n_neurons[-2], n_neurons[-2]), (n_neurons[-2], par_dim)]
    flops = 2 * batch * sum(fi * fo for fi, fo in dims)
    n_bn = (len(n_neurons) - 1) + 2
    transcendentals = batch * (par_dim - 1) + n_bn * max(n_neurons) + batch
    bytes_accessed = (x.size * x.dtype.itemsize
                      + w_all.size * w_all.dtype.itemsize
                      + v_all.size * v_all.dtype.itemsize
                      + batch * total_out * 4)
    cost = pl.CostEstimate(flops=int(flops),
                           transcendentals=int(transcendentals),
                           bytes_accessed=int(bytes_accessed))

    # Footprint is << the scoped VMEM default on v5e/v6e/v7x, so no
    # vmem_limit_bytes override is needed at these shapes.
    return pl.pallas_call(
        kernel,
        out_shape=jax.ShapeDtypeStruct((batch, total_out), jnp.float32),
        in_specs=[vmem, vmem, vmem],
        out_specs=vmem,
        cost_estimate=cost,
    )(x, w_all, v_all)


# -------------------------- deterministic parameters --------------------------

def init_params(key, latent_dim, par_dim, output_dim, n_neurons):
    """Deterministic synthetic parameters.  Linear weights stored (in, out);
    biases / BN params stored (1, features) for clean 2-D broadcasting."""
    keys = iter(jax.random.split(key, 64))

    def lin(fan_in, fan_out, bias):
        w = 0.1 * jax.random.normal(next(keys), (fan_in, fan_out), jnp.float32)
        b = 0.05 * jax.random.normal(next(keys), (1, fan_out), jnp.float32) if bias else None
        return w, b

    def bn(feat):
        g = 1.0 + 0.1 * jax.random.normal(next(keys), (1, feat), jnp.float32)
        be = 0.1 * jax.random.normal(next(keys), (1, feat), jnp.float32)
        return g, be

    p = {}
    p["w_in"], p["b_in"] = lin(latent_dim, n_neurons[0], True)
    p["hidden"] = []
    for i in range(len(n_neurons) - 1):
        w, b = lin(n_neurons[i], n_neurons[i + 1], True)
        g, be = bn(n_neurons[i + 1])
        p["hidden"].append((w, b, g, be))
    p["w_state"], _ = lin(n_neurons[-1], output_dim, False)
    p["w_p1"], p["b_p1"] = lin(n_neurons[-1], n_neurons[-2], True)
    p["g_p1"], p["be_p1"] = bn(n_neurons[-2])
    p["w_p2"], p["b_p2"] = lin(n_neurons[-2], n_neurons[-2], True)
    p["g_p2"], p["be_p2"] = bn(n_neurons[-2])
    p["w_loc"], _ = lin(n_neurons[-2], par_dim - 1, False)
    p["w_dem"], _ = lin(n_neurons[-2], 1, False)
    return p


# ------------------------------ pure-JAX reference ------------------------------

def generator_reference(x, p):
    hp = jax.lax.Precision.HIGHEST

    def leaky(v):
        return jnp.where(v > 0, v, LEAK_SLOPE * v)

    def bnorm(v, g, be):
        m = jnp.mean(v, axis=0, keepdims=True)
        var = jnp.mean((v - m) ** 2, axis=0, keepdims=True)
        return (v - m) / jnp.sqrt(var + BN_EPS) * g + be

    h = leaky(jnp.dot(x, p["w_in"], precision=hp) + p["b_in"])
    for (w, b, g, be) in p["hidden"]:
        h = bnorm(leaky(jnp.dot(h, w, precision=hp) + b), g, be)
    state = jnp.dot(h, p["w_state"], precision=hp)
    par = bnorm(leaky(jnp.dot(h, p["w_p1"], precision=hp) + p["b_p1"]),
                p["g_p1"], p["be_p1"])
    par = bnorm(leaky(jnp.dot(par, p["w_p2"], precision=hp) + p["b_p2"]),
                p["g_p2"], p["be_p2"])
    loc = jax.nn.softmax(jnp.dot(par, p["w_loc"], precision=hp), axis=1)
    dem = jnp.dot(par, p["w_dem"], precision=hp)
    return jnp.concatenate([state, dem, loc], axis=1)


# ------------------------------------ main ------------------------------------

if __name__ == "__main__":
    # Small shapes consistent with the module (leak=True branch).
    latent_dim = 16
    par_dim = 8          # leak_location has par_dim - 1 = 7 outputs
    output_dim = 24
    n_neurons = [32, 32, 32]
    batch = 8

    key = jax.random.PRNGKey(0)
    k_param, k_x = jax.random.split(key)
    params = init_params(k_param, latent_dim, par_dim, output_dim, n_neurons)
    x = jax.random.normal(k_x, (batch, latent_dim), jnp.float32)

    out = generator_forward(x, params, latent_dim=latent_dim,
                            n_neurons=n_neurons, output_dim=output_dim,
                            par_dim=par_dim)
    out = jax.block_until_ready(out)

    ref = generator_reference(x, params)
    assert out.shape == (batch, output_dim + 1 + (par_dim - 1)), out.shape
    assert bool(jnp.all(jnp.isfinite(out)))
    assert bool(jnp.allclose(out, ref, atol=5e-2, rtol=5e-2)), (
        "max abs diff %g" % float(jnp.max(jnp.abs(out - ref))))

    print("KERNEL_OK")
</pallas_src>

<mosaic_0001>
module attributes {stable_mosaic.version = 11 : i64} {
  func.func @_generator_kernel(%arg0: memref<8x16xf32, #tpu.memory_space<vmem>>, %arg1: memref<7x32x32xbf16, #tpu.memory_space<vmem>>, %arg2: memref<13x32xf32, #tpu.memory_space<vmem>>, %arg3: memref<8x32xf32, #tpu.memory_space<vmem>>) attributes {dimension_semantics = [], scalar_prefetch = 0 : i64, scratch_operands = 0 : i64, tpu.core_type = #tpu.core_type<tc>} {
    %c0 = arith.constant 0 : index
    %c0_0 = arith.constant 0 : index
    %0 = vector.load %arg0[%c0, %c0_0] : memref<8x16xf32, #tpu.memory_space<vmem>>, vector<8x16xf32>
    %c0_1 = arith.constant 0 : index
    %c0_2 = arith.constant 0 : index
    %c0_3 = arith.constant 0 : index
    %1 = vector.load %arg1[%c0_1, %c0_2, %c0_3] : memref<7x32x32xbf16, #tpu.memory_space<vmem>>, vector<1x16x32xbf16>
    %2 = vector.shape_cast %1 : vector<1x16x32xbf16> to vector<16x32xbf16>
    %3 = arith.truncf %0 : vector<8x16xf32> to vector<8x16xbf16>
    %cst = arith.constant dense<0.000000e+00> : vector<8x32xf32>
    %4 = tpu.matmul %3, %2, %cst {dimension_numbers = #tpu.dot_dimension_numbers<[1], [0], [0], [1], [0, 0, 1, 1], [], []>} : vector<8x16xbf16>, vector<16x32xbf16>, vector<8x32xf32> -> vector<8x32xf32>
    %c0_4 = arith.constant 0 : index
    %c0_5 = arith.constant 0 : index
    %5 = vector.load %arg2[%c0_4, %c0_5] : memref<13x32xf32, #tpu.memory_space<vmem>>, vector<1x32xf32>
    %6 = vector.broadcast %5 : vector<1x32xf32> to vector<8x32xf32>
    %7 = arith.addf %4, %6 : vector<8x32xf32>
    %cst_6 = arith.constant 0.000000e+00 : f32
    %8 = vector.broadcast %cst_6 : f32 to vector<8x32xf32>
    %9 = arith.cmpf ogt, %7, %8 : vector<8x32xf32>
    %cst_7 = arith.constant 1.000000e-01 : f32
    %10 = vector.broadcast %cst_7 : f32 to vector<8x32xf32>
    %11 = arith.mulf %10, %7 : vector<8x32xf32>
    %12 = arith.select %9, %7, %11 : vector<8x32xi1>, vector<8x32xf32>
    %c1 = arith.constant 1 : index
    %c0_8 = arith.constant 0 : index
    %c0_9 = arith.constant 0 : index
    %13 = vector.load %arg1[%c1, %c0_8, %c0_9] : memref<7x32x32xbf16, #tpu.memory_space<vmem>>, vector<1x32x32xbf16>
    %14 = vector.shape_cast %13 : vector<1x32x32xbf16> to vector<32x32xbf16>
    %15 = arith.truncf %12 : vector<8x32xf32> to vector<8x32xbf16>
    %cst_10 = arith.constant dense<0.000000e+00> : vector<8x32xf32>
    %16 = tpu.matmul %15, %14, %cst_10 {dimension_numbers = #tpu.dot_dimension_numbers<[1], [0], [0], [1], [0, 0, 1, 1], [], []>} : vector<8x32xbf16>, vector<32x32xbf16>, vector<8x32xf32> -> vector<8x32xf32>
    %c1_11 = arith.constant 1 : index
    %c0_12 = arith.constant 0 : index
    %17 = vector.load %arg2[%c1_11, %c0_12] : memref<13x32xf32, #tpu.memory_space<vmem>>, vector<1x32xf32>
    %18 = vector.broadcast %17 : vector<1x32xf32> to vector<8x32xf32>
    %19 = arith.addf %16, %18 : vector<8x32xf32>
    %cst_13 = arith.constant 0.000000e+00 : f32
    %20 = vector.broadcast %cst_13 : f32 to vector<8x32xf32>
    %21 = arith.cmpf ogt, %19, %20 : vector<8x32xf32>
    %cst_14 = arith.constant 1.000000e-01 : f32
    %22 = vector.broadcast %cst_14 : f32 to vector<8x32xf32>
    %23 = arith.mulf %22, %19 : vector<8x32xf32>
    %24 = arith.select %21, %19, %23 : vector<8x32xi1>, vector<8x32xf32>
    %c2 = arith.constant 2 : index
    %c0_15 = arith.constant 0 : index
    %25 = vector.load %arg2[%c2, %c0_15] : memref<13x32xf32, #tpu.memory_space<vmem>>, vector<1x32xf32>
    %c3 = arith.constant 3 : index
    %c0_16 = arith.constant 0 : index
    %26 = vector.load %arg2[%c3, %c0_16] : memref<13x32xf32, #tpu.memory_space<vmem>>, vector<1x32xf32>
    %cst_17 = arith.constant dense<0.000000e+00> : vector<32xf32>
    %27 = vector.multi_reduction <add>, %24, %cst_17 [0] : vector<8x32xf32> to vector<32xf32>
    %28 = vector.shape_cast %27 : vector<32xf32> to vector<1x32xf32>
    %cst_18 = arith.constant 8.000000e+00 : f32
    %29 = vector.broadcast %cst_18 : f32 to vector<1x32xf32>
    %30 = arith.divf %28, %29 : vector<1x32xf32>
    %31 = arith.mulf %24, %24 : vector<8x32xf32>
    %cst_19 = arith.constant dense<0.000000e+00> : vector<32xf32>
    %32 = vector.multi_reduction <add>, %31, %cst_19 [0] : vector<8x32xf32> to vector<32xf32>
    %33 = vector.shape_cast %32 : vector<32xf32> to vector<1x32xf32>
    %cst_20 = arith.constant 8.000000e+00 : f32
    %34 = vector.broadcast %cst_20 : f32 to vector<1x32xf32>
    %35 = arith.divf %33, %34 : vector<1x32xf32>
    %36 = arith.mulf %30, %30 : vector<1x32xf32>
    %37 = arith.subf %35, %36 : vector<1x32xf32>
    %cst_21 = arith.constant 0.000000e+00 : f32
    %38 = vector.broadcast %cst_21 : f32 to vector<1x32xf32>
    %39 = arith.maximumf %37, %38 : vector<1x32xf32>
    %cst_22 = arith.constant 9.99999974E-6 : f32
    %40 = vector.broadcast %cst_22 : f32 to vector<1x32xf32>
    %41 = arith.addf %39, %40 : vector<1x32xf32>
    %42 = math.rsqrt %41 : vector<1x32xf32>
    %43 = arith.mulf %42, %25 : vector<1x32xf32>
    %44 = vector.broadcast %30 : vector<1x32xf32> to vector<8x32xf32>
    %45 = arith.subf %24, %44 : vector<8x32xf32>
    %46 = vector.broadcast %43 : vector<1x32xf32> to vector<8x32xf32>
    %47 = arith.mulf %45, %46 : vector<8x32xf32>
    %48 = vector.broadcast %26 : vector<1x32xf32> to vector<8x32xf32>
    %49 = arith.addf %47, %48 : vector<8x32xf32>
    %c2_23 = arith.constant 2 : index
    %c0_24 = arith.constant 0 : index
    %c0_25 = arith.constant 0 : index
    %50 = vector.load %arg1[%c2_23, %c0_24, %c0_25] : memref<7x32x32xbf16, #tpu.memory_space<vmem>>, vector<1x32x32xbf16>
    %51 = vector.shape_cast %50 : vector<1x32x32xbf16> to vector<32x32xbf16>
    %52 = arith.truncf %49 : vector<8x32xf32> to vector<8x32xbf16>
    %cst_26 = arith.constant dense<0.000000e+00> : vector<8x32xf32>
    %53 = tpu.matmul %52, %51, %cst_26 {dimension_numbers = #tpu.dot_dimension_numbers<[1], [0], [0], [1], [0, 0, 1, 1], [], []>} : vector<8x32xbf16>, vector<32x32xbf16>, vector<8x32xf32> -> vector<8x32xf32>
    %c4 = arith.constant 4 : index
    %c0_27 = arith.constant 0 : index
    %54 = vector.load %arg2[%c4, %c0_27] : memref<13x32xf32, #tpu.memory_space<vmem>>, vector<1x32xf32>
    %55 = vector.broadcast %54 : vector<1x32xf32> to vector<8x32xf32>
    %56 = arith.addf %53, %55 : vector<8x32xf32>
    %cst_28 = arith.constant 0.000000e+00 : f32
    %57 = vector.broadcast %cst_28 : f32 to vector<8x32xf32>
    %58 = arith.cmpf ogt, %56, %57 : vector<8x32xf32>
    %cst_29 = arith.constant 1.000000e-01 : f32
    %59 = vector.broadcast %cst_29 : f32 to vector<8x32xf32>
    %60 = arith.mulf %59, %56 : vector<8x32xf32>
    %61 = arith.select %58, %56, %60 : vector<8x32xi1>, vector<8x32xf32>
    %c5 = arith.constant 5 : index
    %c0_30 = arith.constant 0 : index
    %62 = vector.load %arg2[%c5, %c0_30] : memref<13x32xf32, #tpu.memory_space<vmem>>, vector<1x32xf32>
    %c6 = arith.constant 6 : index
    %c0_31 = arith.constant 0 : index
    %63 = vector.load %arg2[%c6, %c0_31] : memref<13x32xf32, #tpu.memory_space<vmem>>, vector<1x32xf32>
    %cst_32 = arith.constant dense<0.000000e+00> : vector<32xf32>
    %64 = vector.multi_reduction <add>, %61, %cst_32 [0] : vector<8x32xf32> to vector<32xf32>
    %65 = vector.shape_cast %64 : vector<32xf32> to vector<1x32xf32>
    %cst_33 = arith.constant 8.000000e+00 : f32
    %66 = vector.broadcast %cst_33 : f32 to vector<1x32xf32>
    %67 = arith.divf %65, %66 : vector<1x32xf32>
    %68 = arith.mulf %61, %61 : vector<8x32xf32>
    %cst_34 = arith.constant dense<0.000000e+00> : vector<32xf32>
    %69 = vector.multi_reduction <add>, %68, %cst_34 [0] : vector<8x32xf32> to vector<32xf32>
    %70 = vector.shape_cast %69 : vector<32xf32> to vector<1x32xf32>
    %cst_35 = arith.constant 8.000000e+00 : f32
    %71 = vector.broadcast %cst_35 : f32 to vector<1x32xf32>
    %72 = arith.divf %70, %71 : vector<1x32xf32>
    %73 = arith.mulf %67, %67 : vector<1x32xf32>
    %74 = arith.subf %72, %73 : vector<1x32xf32>
    %cst_36 = arith.constant 0.000000e+00 : f32
    %75 = vector.broadcast %cst_36 : f32 to vector<1x32xf32>
    %76 = arith.maximumf %74, %75 : vector<1x32xf32>
    %cst_37 = arith.constant 9.99999974E-6 : f32
    %77 = vector.broadcast %cst_37 : f32 to vector<1x32xf32>
    %78 = arith.addf %76, %77 : vector<1x32xf32>
    %79 = math.rsqrt %78 : vector<1x32xf32>
    %80 = arith.mulf %79, %62 : vector<1x32xf32>
    %81 = vector.broadcast %67 : vector<1x32xf32> to vector<8x32xf32>
    %82 = arith.subf %61, %81 : vector<8x32xf32>
    %83 = vector.broadcast %80 : vector<1x32xf32> to vector<8x32xf32>
    %84 = arith.mulf %82, %83 : vector<8x32xf32>
    %85 = vector.broadcast %63 : vector<1x32xf32> to vector<8x32xf32>
    %86 = arith.addf %84, %85 : vector<8x32xf32>
    %87 = arith.truncf %86 : vector<8x32xf32> to vector<8x32xbf16>
    %c3_38 = arith.constant 3 : index
    %c0_39 = arith.constant 0 : index
    %c0_40 = arith.constant 0 : index
    %88 = vector.load %arg1[%c3_38, %c0_39, %c0_40] : memref<7x32x32xbf16, #tpu.memory_space<vmem>>, vector<1x32x24xbf16>
    %89 = vector.shape_cast %88 : vector<1x32x24xbf16> to vector<32x24xbf16>
    %cst_41 = arith.constant dense<0.000000e+00> : vector<8x24xf32>
    %90 = tpu.matmul %87, %89, %cst_41 {dimension_numbers = #tpu.dot_dimension_numbers<[1], [0], [0], [1], [0, 0, 1, 1], [], []>} : vector<8x32xbf16>, vector<32x24xbf16>, vector<8x24xf32> -> vector<8x24xf32>
    %c4_42 = arith.constant 4 : index
    %c0_43 = arith.constant 0 : index
    %c0_44 = arith.constant 0 : index
    %91 = vector.load %arg1[%c4_42, %c0_43, %c0_44] : memref<7x32x32xbf16, #tpu.memory_space<vmem>>, vector<1x32x32xbf16>
    %92 = vector.shape_cast %91 : vector<1x32x32xbf16> to vector<32x32xbf16>
    %cst_45 = arith.constant dense<0.000000e+00> : vector<8x32xf32>
    %93 = tpu.matmul %87, %92, %cst_45 {dimension_numbers = #tpu.dot_dimension_numbers<[1], [0], [0], [1], [0, 0, 1, 1], [], []>} : vector<8x32xbf16>, vector<32x32xbf16>, vector<8x32xf32> -> vector<8x32xf32>
    %c7 = arith.constant 7 : index
    %c0_46 = arith.constant 0 : index
    %94 = vector.load %arg2[%c7, %c0_46] : memref<13x32xf32, #tpu.memory_space<vmem>>, vector<1x32xf32>
    %95 = vector.broadcast %94 : vector<1x32xf32> to vector<8x32xf32>
    %96 = arith.addf %93, %95 : vector<8x32xf32>
    %cst_47 = arith.constant 0.000000e+00 : f32
    %97 = vector.broadcast %cst_47 : f32 to vector<8x32xf32>
    %98 = arith.cmpf ogt, %96, %97 : vector<8x32xf32>
    %cst_48 = arith.constant 1.000000e-01 : f32
    %99 = vector.broadcast %cst_48 : f32 to vector<8x32xf32>
    %100 = arith.mulf %99, %96 : vector<8x32xf32>
    %101 = arith.select %98, %96, %100 : vector<8x32xi1>, vector<8x32xf32>
    %c8 = arith.constant 8 : index
    %c0_49 = arith.constant 0 : index
    %102 = vector.load %arg2[%c8, %c0_49] : memref<13x32xf32, #tpu.memory_space<vmem>>, vector<1x32xf32>
    %c9 = arith.constant 9 : index
    %c0_50 = arith.constant 0 : index
    %103 = vector.load %arg2[%c9, %c0_50] : memref<13x32xf32, #tpu.memory_space<vmem>>, vector<1x32xf32>
    %cst_51 = arith.constant dense<0.000000e+00> : vector<32xf32>
    %104 = vector.multi_reduction <add>, %101, %cst_51 [0] : vector<8x32xf32> to vector<32xf32>
    %105 = vector.shape_cast %104 : vector<32xf32> to vector<1x32xf32>
    %cst_52 = arith.constant 8.000000e+00 : f32
    %106 = vector.broadcast %cst_52 : f32 to vector<1x32xf32>
    %107 = arith.divf %105, %106 : vector<1x32xf32>
    %108 = arith.mulf %101, %101 : vector<8x32xf32>
    %cst_53 = arith.constant dense<0.000000e+00> : vector<32xf32>
    %109 = vector.multi_reduction <add>, %108, %cst_53 [0] : vector<8x32xf32> to vector<32xf32>
    %110 = vector.shape_cast %109 : vector<32xf32> to vector<1x32xf32>
    %cst_54 = arith.constant 8.000000e+00 : f32
    %111 = vector.broadcast %cst_54 : f32 to vector<1x32xf32>
    %112 = arith.divf %110, %111 : vector<1x32xf32>
    %113 = arith.mulf %107, %107 : vector<1x32xf32>
    %114 = arith.subf %112, %113 : vector<1x32xf32>
    %cst_55 = arith.constant 0.000000e+00 : f32
    %115 = vector.broadcast %cst_55 : f32 to vector<1x32xf32>
    %116 = arith.maximumf %114, %115 : vector<1x32xf32>
    %cst_56 = arith.constant 9.99999974E-6 : f32
    %117 = vector.broadcast %cst_56 : f32 to vector<1x32xf32>
    %118 = arith.addf %116, %117 : vector<1x32xf32>
    %119 = math.rsqrt %118 : vector<1x32xf32>
    %120 = arith.mulf %119, %102 : vector<1x32xf32>
    %121 = vector.broadcast %107 : vector<1x32xf32> to vector<8x32xf32>
    %122 = arith.subf %101, %121 : vector<8x32xf32>
    %123 = vector.broadcast %120 : vector<1x32xf32> to vector<8x32xf32>
    %124 = arith.mulf %122, %123 : vector<8x32xf32>
    %125 = vector.broadcast %103 : vector<1x32xf32> to vector<8x32xf32>
    %126 = arith.addf %124, %125 : vector<8x32xf32>
    %c5_57 = arith.constant 5 : index
    %c0_58 = arith.constant 0 : index
    %c0_59 = arith.constant 0 : index
    %127 = vector.load %arg1[%c5_57, %c0_58, %c0_59] : memref<7x32x32xbf16, #tpu.memory_space<vmem>>, vector<1x32x32xbf16>
    %128 = vector.shape_cast %127 : vector<1x32x32xbf16> to vector<32x32xbf16>
    %129 = arith.truncf %126 : vector<8x32xf32> to vector<8x32xbf16>
    %cst_60 = arith.constant dense<0.000000e+00> : vector<8x32xf32>
    %130 = tpu.matmul %129, %128, %cst_60 {dimension_numbers = #tpu.dot_dimension_numbers<[1], [0], [0], [1], [0, 0, 1, 1], [], []>} : vector<8x32xbf16>, vector<32x32xbf16>, vector<8x32xf32> -> vector<8x32xf32>
    %c10 = arith.constant 10 : index
    %c0_61 = arith.constant 0 : index
    %131 = vector.load %arg2[%c10, %c0_61] : memref<13x32xf32, #tpu.memory_space<vmem>>, vector<1x32xf32>
    %132 = vector.broadcast %131 : vector<1x32xf32> to vector<8x32xf32>
    %133 = arith.addf %130, %132 : vector<8x32xf32>
    %cst_62 = arith.constant 0.000000e+00 : f32
    %134 = vector.broadcast %cst_62 : f32 to vector<8x32xf32>
    %135 = arith.cmpf ogt, %133, %134 : vector<8x32xf32>
    %cst_63 = arith.constant 1.000000e-01 : f32
    %136 = vector.broadcast %cst_63 : f32 to vector<8x32xf32>
    %137 = arith.mulf %136, %133 : vector<8x32xf32>
    %138 = arith.select %135, %133, %137 : vector<8x32xi1>, vector<8x32xf32>
    %c11 = arith.constant 11 : index
    %c0_64 = arith.constant 0 : index
    %139 = vector.load %arg2[%c11, %c0_64] : memref<13x32xf32, #tpu.memory_space<vmem>>, vector<1x32xf32>
    %c12 = arith.constant 12 : index
    %c0_65 = arith.constant 0 : index
    %140 = vector.load %arg2[%c12, %c0_65] : memref<13x32xf32, #tpu.memory_space<vmem>>, vector<1x32xf32>
    %cst_66 = arith.constant dense<0.000000e+00> : vector<32xf32>
    %141 = vector.multi_reduction <add>, %138, %cst_66 [0] : vector<8x32xf32> to vector<32xf32>
    %142 = vector.shape_cast %141 : vector<32xf32> to vector<1x32xf32>
    %cst_67 = arith.constant 8.000000e+00 : f32
    %143 = vector.broadcast %cst_67 : f32 to vector<1x32xf32>
    %144 = arith.divf %142, %143 : vector<1x32xf32>
    %145 = arith.mulf %138, %138 : vector<8x32xf32>
    %cst_68 = arith.constant dense<0.000000e+00> : vector<32xf32>
    %146 = vector.multi_reduction <add>, %145, %cst_68 [0] : vector<8x32xf32> to vector<32xf32>
    %147 = vector.shape_cast %146 : vector<32xf32> to vector<1x32xf32>
    %cst_69 = arith.constant 8.000000e+00 : f32
    %148 = vector.broadcast %cst_69 : f32 to vector<1x32xf32>
    %149 = arith.divf %147, %148 : vector<1x32xf32>
    %150 = arith.mulf %144, %144 : vector<1x32xf32>
    %151 = arith.subf %149, %150 : vector<1x32xf32>
    %cst_70 = arith.constant 0.000000e+00 : f32
    %152 = vector.broadcast %cst_70 : f32 to vector<1x32xf32>
    %153 = arith.maximumf %151, %152 : vector<1x32xf32>
    %cst_71 = arith.constant 9.99999974E-6 : f32
    %154 = vector.broadcast %cst_71 : f32 to vector<1x32xf32>
    %155 = arith.addf %153, %154 : vector<1x32xf32>
    %156 = math.rsqrt %155 : vector<1x32xf32>
    %157 = arith.mulf %156, %139 : vector<1x32xf32>
    %158 = vector.broadcast %144 : vector<1x32xf32> to vector<8x32xf32>
    %159 = arith.subf %138, %158 : vector<8x32xf32>
    %160 = vector.broadcast %157 : vector<1x32xf32> to vector<8x32xf32>
    %161 = arith.mulf %159, %160 : vector<8x32xf32>
    %162 = vector.broadcast %140 : vector<1x32xf32> to vector<8x32xf32>
    %163 = arith.addf %161, %162 : vector<8x32xf32>
    %c6_72 = arith.constant 6 : index
    %c0_73 = arith.constant 0 : index
    %c0_74 = arith.constant 0 : index
    %164 = vector.load %arg1[%c6_72, %c0_73, %c0_74] : memref<7x32x32xbf16, #tpu.memory_space<vmem>>, vector<1x32x8xbf16>
    %165 = vector.shape_cast %164 : vector<1x32x8xbf16> to vector<32x8xbf16>
    %166 = arith.truncf %163 : vector<8x32xf32> to vector<8x32xbf16>
    %cst_75 = arith.constant dense<0.000000e+00> : vector<8x8xf32>
    %167 = tpu.matmul %166, %165, %cst_75 {dimension_numbers = #tpu.dot_dimension_numbers<[1], [0], [0], [1], [0, 0, 1, 1], [], []>} : vector<8x32xbf16>, vector<32x8xbf16>, vector<8x8xf32> -> vector<8x8xf32>
    %168 = vector.extract_strided_slice %167 {offsets = [0, 0], sizes = [8, 1], strides = [1, 1]} : vector<8x8xf32> to vector<8x1xf32>
    %169 = vector.extract_strided_slice %167 {offsets = [0, 1], sizes = [8, 7], strides = [1, 1]} : vector<8x8xf32> to vector<8x7xf32>
    %cst_76 = arith.constant dense<0xFF800000> : vector<8xf32>
    %170 = vector.multi_reduction <maximumf>, %169, %cst_76 [1] : vector<8x7xf32> to vector<8xf32>
    %171 = vector.shape_cast %170 : vector<8xf32> to vector<8x1xf32>
    %172 = vector.broadcast %171 : vector<8x1xf32> to vector<8x7xf32>
    %173 = arith.subf %169, %172 : vector<8x7xf32>
    %174 = math.exp %173 : vector<8x7xf32>
    %cst_77 = arith.constant dense<0.000000e+00> : vector<8xf32>
    %175 = vector.multi_reduction <add>, %174, %cst_77 [1] : vector<8x7xf32> to vector<8xf32>
    %176 = vector.shape_cast %175 : vector<8xf32> to vector<8x1xf32>
    %177 = tpu.reciprocal %176 {approx = true} : vector<8x1xf32> -> vector<8x1xf32>
    %178 = vector.broadcast %177 : vector<8x1xf32> to vector<8x7xf32>
    %179 = arith.mulf %174, %178 : vector<8x7xf32>
    %180 = tpu.concatenate %90, %168, %179 in 1 : vector<8x24xf32>, vector<8x1xf32>, vector<8x7xf32> -> vector<8x32xf32>
    %c0_78 = arith.constant 0 : index
    %c0_79 = arith.constant 0 : index
    %181 = vector.load %arg3[%c0_78, %c0_79] : memref<8x32xf32, #tpu.memory_space<vmem>>, vector<8x32xf32>
    tpu.vector_store %arg3[%c0_78, %c0_79], %180 {strides = array<i32>} : memref<8x32xf32, #tpu.memory_space<vmem>>, vector<8x32xf32>,
    return
  }
}

</mosaic_0001>

<llo_original>
// kernel: tpu_custom_call.1
$region0: #{tpu_custom_call.1}
  #allocation0 [shape = 'u32[]', space=smem, size = 0x4, offset = 0x4, fixed_abs, tag = 'smem constant byte address 0x4 - core index']
  #allocation1 [shape = 'u32[144,128]{1,0:T(1,128)}', space=vmem, size = 0x12000, scoped, tag = 'internal scratch']
  %s0 = inlined_call_operand.hbm [shape: f32[8,16], index: 0, kind: input, shape index: {}]
  %s1 = inlined_call_operand.hbm [shape: bf16[7,32,32], index: 1, kind: input, shape index: {}]
  %s2 = inlined_call_operand.hbm [shape: f32[13,32], index: 2, kind: input, shape index: {}]
  %s3 = inlined_call_operand.hbm [shape: f32[8,32], index: 3, kind: output, shape index: {}]
  %s4 = sld [smem:[#allocation0]]
  $region34: #{tpu_custom_call.1} parent=0
    _
  %s6 = ssub.s32 1, %s4
  %s7 = scalar_select 0, %s6, %s4
  $region1: #{tpu_custom_call.1} parent=0
    #allocation2 [shape = 'u8[4096]{0}', space=vmem, size = 0x1000, scoped, tag = 'input window, operand 0, single buffered']
    #allocation3 [shape = 's32[1]{0}', space=sflag, size = 0x4, scoped, tag = 'scoped memory for tpu_custom_call.1']
    #allocation4 [shape = 's32[1]{0}', space=sflag, size = 0x4, scoped, tag = 'scoped memory for tpu_custom_call.1']
    #allocation5 [shape = 'u8[57344]{0}', space=vmem, size = 0xe000, scoped, tag = 'input window, operand 1, single buffered']
    #allocation6 [shape = 's32[1]{0}', space=sflag, size = 0x4, scoped, tag = 'scoped memory for tpu_custom_call.1']
    #allocation7 [shape = 'u8[8192]{0}', space=vmem, size = 0x2000, scoped, tag = 'input window, operand 2, single buffered']
    #allocation8 [shape = 'u8[4096]{0}', space=vmem, size = 0x1000, scoped, tag = 'output window, operand 0, single buffered']
    %8 = vsyncpa [#allocation3], 0
    %9 = vsyncpa [#allocation6], 0
    %10 = vsyncpa [#allocation4], 0
    // Predicated region
    $region2: #{tpu_custom_call.1} parent=1 // pred_check
      _
    $region3: #{tpu_custom_call.1} parent=1 // pred_check_branch
      %12 = sbr.rel (0) target = $region5
    $region4: #{tpu_custom_call.1} parent=1 // pred_region
      %s14 = ssub.s32 128, 128
      %15 = vsyncadd [#allocation3], %s14
      %s17 = sshll.u32 [#allocation2], 4
      %s18 = int_to_ptr.vmem [resolvable:$true] %s17
      %20 = dma.hbm_to_vmem [thread:$0]  %s0, 128, %s18, [#allocation3]
    $region5: #{tpu_custom_call.1} parent=1 // pred_fallthru
      _
    // Predicated region
    $region6: #{tpu_custom_call.1} parent=1 // pred_check
      _
    $region7: #{tpu_custom_call.1} parent=1 // pred_check_branch
      %22 = sbr.rel (0) target = $region9
    $region8: #{tpu_custom_call.1} parent=1 // pred_region
      %s24 = ssub.s32 1792, 1792
      %25 = vsyncadd [#allocation6], %s24
      %s26 = sshll.u32 [#allocation5], 4
      %s27 = int_to_ptr.vmem [resolvable:$true] %s26
      %32 = dma.hbm_to_vmem [thread:$0]  %s1, 1792, %s27, [#allocation6], 64, 64, 4
    $region9: #{tpu_custom_call.1} parent=1 // pred_fallthru
      _
    // Predicated region
    $region10: #{tpu_custom_call.1} parent=1 // pred_check
      _
    $region11: #{tpu_custom_call.1} parent=1 // pred_check_branch
      %34 = sbr.rel (0) target = $region13
    $region12: #{tpu_custom_call.1} parent=1 // pred_region
      %s36 = ssub.s32 256, 256
      %37 = vsyncadd [#allocation6], %s36
      %s38 = sshll.u32 [#allocation7], 4
      %s39 = int_to_ptr.vmem [resolvable:$true] %s38
      %44 = dma.hbm_to_vmem [thread:$0]  %s2, 256, %s39, [#allocation6], 128, 128, 8
    $region13: #{tpu_custom_call.1} parent=1 // pred_fallthru
      _
    // Predicated region
    $region14: #{tpu_custom_call.1} parent=1 // pred_check
      _
    $region15: #{tpu_custom_call.1} parent=1 // pred_check_branch
      %46 = sbr.rel (0) target = $region17
    $region16: #{tpu_custom_call.1} parent=1 // pred_region
      %47 = dma.done [#allocation3], 128
    $region17: #{tpu_custom_call.1} parent=1 // pred_fallthru
      _
    // Predicated region
    $region18: #{tpu_custom_call.1} parent=1 // pred_check
      _
    $region19: #{tpu_custom_call.1} parent=1 // pred_check_branch
      %49 = sbr.rel (0) target = $region21
    $region20: #{tpu_custom_call.1} parent=1 // pred_region
      %50 = dma.done [#allocation6], 1792
    $region21: #{tpu_custom_call.1} parent=1 // pred_fallthru
      _
    // Predicated region
    $region22: #{tpu_custom_call.1} parent=1 // pred_check
      _
    $region23: #{tpu_custom_call.1} parent=1 // pred_check_branch
      %52 = sbr.rel (0) target = $region25
    $region24: #{tpu_custom_call.1} parent=1 // pred_region
      %53 = dma.done [#allocation6], 256
    $region25: #{tpu_custom_call.1} parent=1 // pred_fallthru
      _
    %v55 = vld [vmem:[#allocation2] sm:$0xff]
    %v56 = vld [vmem:[#allocation5] sm:$0xf]
    %v57 = vld [vmem:[#allocation5 + $0x4] sm:$0xf]
    %v58 = vpack.c.bf16 %v55, %v55
    %v59 = vld [vmem:[#allocation7] sm:$0x1]
    %v60 = vlaneseq
    %v61 = vshrl.u32 %v60, 7
    %v62 = vsub.s32 0, %v61
    %v63 = vrot.slane %v59, %v62
    %v66 = vunpack.c.l.b16 %v56
    %v67 = vunpack.c.l.b16 %v57
    %v68 = vpack.c.b16 %v67, %v66
    %vm70 = vcmask 130048
    %v72 = vsel %vm70, %v58, 0
    %74 = vmatprep.subr.bf16.mxu0 0
    %75 = vmatpush1.bf16.msra.mxu0 %v68
    %76 = vmatprep.subr.bf16.mxu0 0
    %77 = vmatpush1.bf16.msra.mxu0 0
    %78 = vmatprep.subr.bf16.mxu0 0
    %79 = vmatpush1.bf16.msra.mxu0 0
    %80 = vmatprep.subr.bf16.mxu0 0
    %81 = vmatpush1.bf16.msra.mxu0 0
    %82 = vmatprep.subr.bf16.mxu0 0
    %83 = vmatpush1.bf16.msra.mxu0 0
    %84 = vmatprep.subr.bf16.mxu0 0
    %85 = vmatpush1.bf16.msra.mxu0 0
    %86 = vmatprep.subr.bf16.mxu0 0
    %87 = vmatpush1.bf16.msra.mxu0 0
    %88 = vmatprep.subr.bf16.mxu0 0
    %89 = vmatpush1.bf16.msra.mxu0 0
    %90 = vmatprep.subr.bf16.mxu0 0
    %91 = vmatpush1.bf16.msra.mxu0 0
    %92 = vmatprep.subr.bf16.mxu0 0
    %93 = vmatpush1.bf16.msra.mxu0 0
    %94 = vmatprep.subr.bf16.mxu0 0
    %95 = vmatpush1.bf16.msra.mxu0 0
    %96 = vmatprep.subr.bf16.mxu0 0
    %97 = vmatpush1.bf16.msra.mxu0 0
    %98 = vmatprep.subr.bf16.mxu0 0
    %99 = vmatpush1.bf16.msra.mxu0 0
    %100 = vmatprep.subr.bf16.mxu0 0
    %101 = vmatpush1.bf16.msra.mxu0 0
    %102 = vmatprep.subr.bf16.mxu0 0
    %103 = vmatpush1.bf16.msra.mxu0 0
    %104 = vmatprep.subr.bf16.mxu0 0
    %105 = vmatpush1.bf16.msra.mxu0 0
    %106 = vmatprep.mubr.bf16.mxu0 0
    %107 = vmatmul.mubr.bf16.gmra.mrb[0].mxu0 %v72
    %v108 = vpop.f32.mrb[0].mxu0
    %v109 = vadd.f32 %v63, %v108
    %v110 = vpop.f32.mrb[0].mxu0
    %v111 = vpop.f32.mrb[0].mxu0
    %v112 = vpop.f32.mrb[0].mxu0
    %113 = vdwg.mxu0
    %vm114 = vcmp.gt.f32.partialorder %v109, 0.0
    %v115 = vmul.f32 %v109, 0.1
    %v116 = vsel %vm114, %v109, %v115
    %s117 = scalar_lea.vmem [#allocation5], 16
    %v118 = vld [vmem:[%s117] sm:$0xf]
    %v119 = vld [vmem:[%s117 + $0x4] sm:$0xf]
    %v120 = vld [vmem:[%s117 + $0x8] sm:$0xf]
    %v121 = vld [vmem:[%s117 + $0xc] sm:$0xf]
    %v122 = vpack.c.bf16 %v116, %v116
    %v123 = vld [vmem:[#allocation7 + $0x1] sm:$0x1]
    %v124 = vlaneseq
    %v125 = vshrl.u32 %v124, 7
    %v126 = vsub.s32 0, %v125
    %v127 = vrot.slane %v123, %v126
    %v132 = vunpack.c.l.b16 %v118
    %v133 = vunpack.c.l.b16 %v119
    %v134 = vunpack.c.l.b16 %v120
    %v135 = vunpack.c.l.b16 %v121
    %v136 = vpack.c.b16 %v133, %v132
    %v137 = vpack.c.b16 %v135, %v134
    %vm140 = vcmask 261120
    %v142 = vsel %vm140, %v122, 0
    %144 = vmatprep.subr.bf16.mxu0 0
    %145 = vmatpush1.bf16.msra.mxu0 %v136
    %146 = vmatprep.subr.bf16.mxu0 0
    %147 = vmatpush1.bf16.msra.mxu0 %v137
    %148 = vmatprep.subr.bf16.mxu0 0
    %149 = vmatpush1.bf16.msra.mxu0 0
    %150 = vmatprep.subr.bf16.mxu0 0
    %151 = vmatpush1.bf16.msra.mxu0 0
    %152 = vmatprep.subr.bf16.mxu0 0
    %153 = vmatpush1.bf16.msra.mxu0 0
    %154 = vmatprep.subr.bf16.mxu0 0
    %155 = vmatpush1.bf16.msra.mxu0 0
    %156 = vmatprep.subr.bf16.mxu0 0
    %157 = vmatpush1.bf16.msra.mxu0 0
    %158 = vmatprep.subr.bf16.mxu0 0
    %159 = vmatpush1.bf16.msra.mxu0 0
    %160 = vmatprep.subr.bf16.mxu0 0
    %161 = vmatpush1.bf16.msra.mxu0 0
    %162 = vmatprep.subr.bf16.mxu0 0
    %163 = vmatpush1.bf16.msra.mxu0 0
    %164 = vmatprep.subr.bf16.mxu0 0
    %165 = vmatpush1.bf16.msra.mxu0 0
    %166 = vmatprep.subr.bf16.mxu0 0
    %167 = vmatpush1.bf16.msra.mxu0 0
    %168 = vmatprep.subr.bf16.mxu0 0
    %169 = vmatpush1.bf16.msra.mxu0 0
    %170 = vmatprep.subr.bf16.mxu0 0
    %171 = vmatpush1.bf16.msra.mxu0 0
    %172 = vmatprep.subr.bf16.mxu0 0
    %173 = vmatpush1.bf16.msra.mxu0 0
    %174 = vmatprep.subr.bf16.mxu0 0
    %175 = vmatpush1.bf16.msra.mxu0 0
    %176 = vmatprep.mubr.bf16.mxu0 0
    %177 = vmatmul.mubr.bf16.gmra.mrb[0].mxu0 %v142
    %v178 = vpop.f32.mrb[0].mxu0
    %v179 = vadd.f32 %v127, %v178
    %v180 = vpop.f32.mrb[0].mxu0
    %v181 = vpop.f32.mrb[0].mxu0
    %v182 = vpop.f32.mrb[0].mxu0
    %183 = vdwg.mxu0
    %vm184 = vcmp.gt.f32.partialorder %v179, 0.0
    %v185 = vmul.f32 %v179, 0.1
    %v186 = vsel %vm184, %v179, %v185
    %v187 = vld [vmem:[#allocation7 + $0x2] sm:$0x1]
    %v188 = vld [vmem:[#allocation7 + $0x3] sm:$0x1]
    %v189 = vsel %vm140, %v186, 0.0
    %v190 = vrot.slane %v189, 4
    %v191 = vadd.f32 %v189, %v190
    %v192 = vrot.slane %v191, 2
    %v193 = vadd.f32 %v191, %v192
    %v194 = vrot.slane %v193, 1
    %v195 = vadd.f32 %v193, %v194
    %v196 = vrcp.pop 8.0
    %v197 = vmul.f32 %v195, %v196
    %v198 = vmul.f32 %v186, %v186
    %v199 = vsel %vm140, %v198, 0.0
    %v200 = vrot.slane %v199, 4
    %v201 = vadd.f32 %v199, %v200
    %v202 = vrot.slane %v201, 2
    %v203 = vadd.f32 %v201, %v202
    %v204 = vrot.slane %v203, 1
    %v205 = vadd.f32 %v203, %v204
    %v206 = vmul.f32 %v205, %v196
    %v207 = vmul.f32 %v197, %v197
    %v208 = vsub.f32 %v206, %v207
    %v209 = vmax.f32 %v208, 0.0
    %v210 = vadd.f32 %v209, 1e-05
    %v211 = vrsqrt.pop %v210
    %v212 = vmul.f32 %v211, %v187
    %v213 = vsub.f32 %v186, %v197
    %v214 = vlaneseq
    %v215 = vshrl.u32 %v214, 7
    %v216 = vsub.s32 0, %v215
    %v217 = vrot.slane %v212, %v216
    %v218 = vmul.f32 %v213, %v217
    %v219 = vlaneseq
    %v220 = vshrl.u32 %v219, 7
    %v221 = vsub.s32 0, %v220
    %v222 = vrot.slane %v188, %v221
    %v223 = vadd.f32 %v218, %v222
    %s224 = scalar_lea.vmem [#allocation5], 32
    %v225 = vld [vmem:[%s224] sm:$0xf]
    %v226 = vld [vmem:[%s224 + $0x4] sm:$0xf]
    %v227 = vld [vmem:[%s224 + $0x8] sm:$0xf]
    %v228 = vld [vmem:[%s224 + $0xc] sm:$0xf]
    %v229 = vpack.c.bf16 %v223, %v223
    %v230 = vld [vmem:[#allocation7 + $0x4] sm:$0x1]
    %v231 = vlaneseq
    %v232 = vshrl.u32 %v231, 7
    %v233 = vsub.s32 0, %v232
    %v234 = vrot.slane %v230, %v233
    %v239 = vunpack.c.l.b16 %v225
    %v240 = vunpack.c.l.b16 %v226
    %v241 = vunpack.c.l.b16 %v227
    %v242 = vunpack.c.l.b16 %v228
    %v243 = vpack.c.b16 %v240, %v239
    %v244 = vpack.c.b16 %v242, %v241
    %v248 = vsel %vm140, %v229, 0
    %250 = vmatprep.subr.bf16.mxu0 0
    %251 = vmatpush1.bf16.msra.mxu0 %v243
    %252 = vmatprep.subr.bf16.mxu0 0
    %253 = vmatpush1.bf16.msra.mxu0 %v244
    %254 = vmatprep.subr.bf16.mxu0 0
    %255 = vmatpush1.bf16.msra.mxu0 0
    %256 = vmatprep.subr.bf16.mxu0 0
    %257 = vmatpush1.bf16.msra.mxu0 0
    %258 = vmatprep.subr.bf16.mxu0 0
    %259 = vmatpush1.bf16.msra.mxu0 0
    %260 = vmatprep.subr.bf16.mxu0 0
    %261 = vmatpush1.bf16.msra.mxu0 0
    %262 = vmatprep.subr.bf16.mxu0 0
    %263 = vmatpush1.bf16.msra.mxu0 0
    %264 = vmatprep.subr.bf16.mxu0 0
    %265 = vmatpush1.bf16.msra.mxu0 0
    %266 = vmatprep.subr.bf16.mxu0 0
    %267 = vmatpush1.bf16.msra.mxu0 0
    %268 = vmatprep.subr.bf16.mxu0 0
    %269 = vmatpush1.bf16.msra.mxu0 0
    %270 = vmatprep.subr.bf16.mxu0 0
    %271 = vmatpush1.bf16.msra.mxu0 0
    %272 = vmatprep.subr.bf16.mxu0 0
    %273 = vmatpush1.bf16.msra.mxu0 0
    %274 = vmatprep.subr.bf16.mxu0 0
    %275 = vmatpush1.bf16.msra.mxu0 0
    %276 = vmatprep.subr.bf16.mxu0 0
    %277 = vmatpush1.bf16.msra.mxu0 0
    %278 = vmatprep.subr.bf16.mxu0 0
    %279 = vmatpush1.bf16.msra.mxu0 0
    %280 = vmatprep.subr.bf16.mxu0 0
    %281 = vmatpush1.bf16.msra.mxu0 0
    %282 = vmatprep.mubr.bf16.mxu0 0
    %283 = vmatmul.mubr.bf16.gmra.mrb[0].mxu0 %v248
    %v284 = vpop.f32.mrb[0].mxu0
    %v285 = vadd.f32 %v234, %v284
    %v286 = vpop.f32.mrb[0].mxu0
    %v287 = vpop.f32.mrb[0].mxu0
    %v288 = vpop.f32.mrb[0].mxu0
    %289 = vdwg.mxu0
    %vm290 = vcmp.gt.f32.partialorder %v285, 0.0
    %v291 = vmul.f32 %v285, 0.1
    %v292 = vsel %vm290, %v285, %v291
    %v293 = vld [vmem:[#allocation7 + $0x5] sm:$0x1]
    %v294 = vld [vmem:[#allocation7 + $0x6] sm:$0x1]
    %v295 = vsel %vm140, %v292, 0.0
    %v296 = vrot.slane %v295, 4
    %v297 = vadd.f32 %v295, %v296
    %v298 = vrot.slane %v297, 2
    %v299 = vadd.f32 %v297, %v298
    %v300 = vrot.slane %v299, 1
    %v301 = vadd.f32 %v299, %v300
    %v302 = vmul.f32 %v301, %v196
    %v303 = vmul.f32 %v292, %v292
    %v304 = vsel %vm140, %v303, 0.0
    %v305 = vrot.slane %v304, 4
    %v306 = vadd.f32 %v304, %v305
    %v307 = vrot.slane %v306, 2
    %v308 = vadd.f32 %v306, %v307
    %v309 = vrot.slane %v308, 1
    %v310 = vadd.f32 %v308, %v309
    %v311 = vmul.f32 %v310, %v196
    %v312 = vmul.f32 %v302, %v302
    %v313 = vsub.f32 %v311, %v312
    %v314 = vmax.f32 %v313, 0.0
    %v315 = vadd.f32 %v314, 1e-05
    %v316 = vrsqrt.pop %v315
    %v317 = vmul.f32 %v316, %v293
    %v318 = vsub.f32 %v292, %v302
    %v319 = vlaneseq
    %v320 = vshrl.u32 %v319, 7
    %v321 = vsub.s32 0, %v320
    %v322 = vrot.slane %v317, %v321
    %v323 = vmul.f32 %v318, %v322
    %v324 = vlaneseq
    %v325 = vshrl.u32 %v324, 7
    %v326 = vsub.s32 0, %v325
    %v327 = vrot.slane %v294, %v326
    %v328 = vadd.f32 %v323, %v327
    %v329 = vpack.c.bf16 %v328, %v328
    %s330 = scalar_lea.vmem [#allocation5], 48
    %v331 = vld [vmem:[%s330] sm:$0xf]
    %v332 = vld [vmem:[%s330 + $0x4] sm:$0xf]
    %v333 = vld [vmem:[%s330 + $0x8] sm:$0xf]
    %v334 = vld [vmem:[%s330 + $0xc] sm:$0xf]
    %v339 = vunpack.c.l.b16 %v331
    %v340 = vunpack.c.l.b16 %v332
    %v341 = vunpack.c.l.b16 %v333
    %v342 = vunpack.c.l.b16 %v334
    %v343 = vpack.c.b16 %v340, %v339
    %v344 = vpack.c.b16 %v342, %v341
    %v348 = vsel %vm140, %v329, 0
    %350 = vmatprep.subr.bf16.mxu0 0
    %351 = vmatpush1.bf16.msra.mxu0 %v343
    %352 = vmatprep.subr.bf16.mxu0 0
    %353 = vmatpush1.bf16.msra.mxu0 %v344
    %354 = vmatprep.subr.bf16.mxu0 0
    %355 = vmatpush1.bf16.msra.mxu0 0
    %356 = vmatprep.subr.bf16.mxu0 0
    %357 = vmatpush1.bf16.msra.mxu0 0
    %358 = vmatprep.subr.bf16.mxu0 0
    %359 = vmatpush1.bf16.msra.mxu0 0
    %360 = vmatprep.subr.bf16.mxu0 0
    %361 = vmatpush1.bf16.msra.mxu0 0
    %362 = vmatprep.subr.bf16.mxu0 0
    %363 = vmatpush1.bf16.msra.mxu0 0
    %364 = vmatprep.subr.bf16.mxu0 0
    %365 = vmatpush1.bf16.msra.mxu0 0
    %366 = vmatprep.subr.bf16.mxu0 0
    %367 = vmatpush1.bf16.msra.mxu0 0
    %368 = vmatprep.subr.bf16.mxu0 0
    %369 = vmatpush1.bf16.msra.mxu0 0
    %370 = vmatprep.subr.bf16.mxu0 0
    %371 = vmatpush1.bf16.msra.mxu0 0
    %372 = vmatprep.subr.bf16.mxu0 0
    %373 = vmatpush1.bf16.msra.mxu0 0
    %374 = vmatprep.subr.bf16.mxu0 0
    %375 = vmatpush1.bf16.msra.mxu0 0
    %376 = vmatprep.subr.bf16.mxu0 0
    %377 = vmatpush1.bf16.msra.mxu0 0
    %378 = vmatprep.subr.bf16.mxu0 0
    %379 = vmatpush1.bf16.msra.mxu0 0
    %380 = vmatprep.subr.bf16.mxu0 0
    %381 = vmatpush1.bf16.msra.mxu0 0
    %382 = vmatprep.mubr.bf16.mxu0 0
    %383 = vmatmul.mubr.bf16.gmra.mrb[0].mxu0 %v348
    %v384 = vpop.f32.mrb[0].mxu0
    %v385 = vadd.f32 0.0, %v384
    %v386 = vpop.f32.mrb[0].mxu0
    %v387 = vpop.f32.mrb[0].mxu0
    %v388 = vpop.f32.mrb[0].mxu0
    %389 = vdwg.mxu0
    %s390 = scalar_lea.vmem [#allocation5], 64
    %v391 = vld [vmem:[%s390] sm:$0xf]
    %v392 = vld [vmem:[%s390 + $0x4] sm:$0xf]
    %v393 = vld [vmem:[%s390 + $0x8] sm:$0xf]
    %v394 = vld [vmem:[%s390 + $0xc] sm:$0xf]
    %v395 = vld [vmem:[#allocation7 + $0x7] sm:$0x1]
    %v396 = vlaneseq
    %v397 = vshrl.u32 %v396, 7
    %v398 = vsub.s32 0, %v397
    %v399 = vrot.slane %v395, %v398
    %v404 = vunpack.c.l.b16 %v391
    %v405 = vunpack.c.l.b16 %v392
    %v406 = vunpack.c.l.b16 %v393
    %v407 = vunpack.c.l.b16 %v394
    %v408 = vpack.c.b16 %v405, %v404
    %v409 = vpack.c.b16 %v407, %v406
    %412 = vmatprep.subr.bf16.mxu0 0
    %413 = vmatpush1.bf16.msra.mxu0 %v408
    %414 = vmatprep.subr.bf16.mxu0 0
    %415 = vmatpush1.bf16.msra.mxu0 %v409
    %416 = vmatprep.subr.bf16.mxu0 0
    %417 = vmatpush1.bf16.msra.mxu0 0
    %418 = vmatprep.subr.bf16.mxu0 0
    %419 = vmatpush1.bf16.msra.mxu0 0
    %420 = vmatprep.subr.bf16.mxu0 0
    %421 = vmatpush1.bf16.msra.mxu0 0
    %422 = vmatprep.subr.bf16.mxu0 0
    %423 = vmatpush1.bf16.msra.mxu0 0
    %424 = vmatprep.subr.bf16.mxu0 0
    %425 = vmatpush1.bf16.msra.mxu0 0
    %426 = vmatprep.subr.bf16.mxu0 0
    %427 = vmatpush1.bf16.msra.mxu0 0
    %428 = vmatprep.subr.bf16.mxu0 0
    %429 = vmatpush1.bf16.msra.mxu0 0
    %430 = vmatprep.subr.bf16.mxu0 0
    %431 = vmatpush1.bf16.msra.mxu0 0
    %432 = vmatprep.subr.bf16.mxu0 0
    %433 = vmatpush1.bf16.msra.mxu0 0
    %434 = vmatprep.subr.bf16.mxu0 0
    %435 = vmatpush1.bf16.msra.mxu0 0
    %436 = vmatprep.subr.bf16.mxu0 0
    %437 = vmatpush1.bf16.msra.mxu0 0
    %438 = vmatprep.subr.bf16.mxu0 0
    %439 = vmatpush1.bf16.msra.mxu0 0
    %440 = vmatprep.subr.bf16.mxu0 0
    %441 = vmatpush1.bf16.msra.mxu0 0
    %442 = vmatprep.subr.bf16.mxu0 0
    %443 = vmatpush1.bf16.msra.mxu0 0
    %444 = vmatprep.mubr.bf16.mxu0 0
    %445 = vmatmul.mubr.bf16.gmra.mrb[0].mxu0 %v348
    %v446 = vpop.f32.mrb[0].mxu0
    %v447 = vadd.f32 %v399, %v446
    %v448 = vpop.f32.mrb[0].mxu0
    %v449 = vpop.f32.mrb[0].mxu0
    %v450 = vpop.f32.mrb[0].mxu0
    %451 = vdwg.mxu0
    %vm452 = vcmp.gt.f32.partialorder %v447, 0.0
    %v453 = vmul.f32 %v447, 0.1
    %v454 = vsel %vm452, %v447, %v453
    %v455 = vld [vmem:[#allocation7 + $0x8] sm:$0x1]
    %v456 = vld [vmem:[#allocation7 + $0x9] sm:$0x1]
    %v457 = vsel %vm140, %v454, 0.0
    %v458 = vrot.slane %v457, 4
    %v459 = vadd.f32 %v457, %v458
    %v460 = vrot.slane %v459, 2
    %v461 = vadd.f32 %v459, %v460
    %v462 = vrot.slane %v461, 1
    %v463 = vadd.f32 %v461, %v462
    %v464 = vmul.f32 %v463, %v196
    %v465 = vmul.f32 %v454, %v454
    %v466 = vsel %vm140, %v465, 0.0
    %v467 = vrot.slane %v466, 4
    %v468 = vadd.f32 %v466, %v467
    %v469 = vrot.slane %v468, 2
    %v470 = vadd.f32 %v468, %v469
    %v471 = vrot.slane %v470, 1
    %v472 = vadd.f32 %v470, %v471
    %v473 = vmul.f32 %v472, %v196
    %v474 = vmul.f32 %v464, %v464
    %v475 = vsub.f32 %v473, %v474
    %v476 = vmax.f32 %v475, 0.0
    %v477 = vadd.f32 %v476, 1e-05
    %v478 = vrsqrt.pop %v477
    %v479 = vmul.f32 %v478, %v455
    %v480 = vsub.f32 %v454, %v464
    %v481 = vlaneseq
    %v482 = vshrl.u32 %v481, 7
    %v483 = vsub.s32 0, %v482
    %v484 = vrot.slane %v479, %v483
    %v485 = vmul.f32 %v480, %v484
    %v486 = vlaneseq
    %v487 = vshrl.u32 %v486, 7
    %v488 = vsub.s32 0, %v487
    %v489 = vrot.slane %v456, %v488
    %v490 = vadd.f32 %v485, %v489
    %s491 = scalar_lea.vmem [#allocation5], 80
    %v492 = vld [vmem:[%s491] sm:$0xf]
    %v493 = vld [vmem:[%s491 + $0x4] sm:$0xf]
    %v494 = vld [vmem:[%s491 + $0x8] sm:$0xf]
    %v495 = vld [vmem:[%s491 + $0xc] sm:$0xf]
    %v496 = vpack.c.bf16 %v490, %v490
    %v497 = vld [vmem:[#allocation7 + $0xa] sm:$0x1]
    %v498 = vlaneseq
    %v499 = vshrl.u32 %v498, 7
    %v500 = vsub.s32 0, %v499
    %v501 = vrot.slane %v497, %v500
    %v506 = vunpack.c.l.b16 %v492
    %v507 = vunpack.c.l.b16 %v493
    %v508 = vunpack.c.l.b16 %v494
    %v509 = vunpack.c.l.b16 %v495
    %v510 = vpack.c.b16 %v507, %v506
    %v511 = vpack.c.b16 %v509, %v508
    %v515 = vsel %vm140, %v496, 0
    %517 = vmatprep.subr.bf16.mxu0 0
    %518 = vmatpush1.bf16.msra.mxu0 %v510
    %519 = vmatprep.subr.bf16.mxu0 0
    %520 = vmatpush1.bf16.msra.mxu0 %v511
    %521 = vmatprep.subr.bf16.mxu0 0
    %522 = vmatpush1.bf16.msra.mxu0 0
    %523 = vmatprep.subr.bf16.mxu0 0
    %524 = vmatpush1.bf16.msra.mxu0 0
    %525 = vmatprep.subr.bf16.mxu0 0
    %526 = vmatpush1.bf16.msra.mxu0 0
    %527 = vmatprep.subr.bf16.mxu0 0
    %528 = vmatpush1.bf16.msra.mxu0 0
    %529 = vmatprep.subr.bf16.mxu0 0
    %530 = vmatpush1.bf16.msra.mxu0 0
    %531 = vmatprep.subr.bf16.mxu0 0
    %532 = vmatpush1.bf16.msra.mxu0 0
    %533 = vmatprep.subr.bf16.mxu0 0
    %534 = vmatpush1.bf16.msra.mxu0 0
    %535 = vmatprep.subr.bf16.mxu0 0
    %536 = vmatpush1.bf16.msra.mxu0 0
    %537 = vmatprep.subr.bf16.mxu0 0
    %538 = vmatpush1.bf16.msra.mxu0 0
    %539 = vmatprep.subr.bf16.mxu0 0
    %540 = vmatpush1.bf16.msra.mxu0 0
    %541 = vmatprep.subr.bf16.mxu0 0
    %542 = vmatpush1.bf16.msra.mxu0 0
    %543 = vmatprep.subr.bf16.mxu0 0
    %544 = vmatpush1.bf16.msra.mxu0 0
    %545 = vmatprep.subr.bf16.mxu0 0
    %546 = vmatpush1.bf16.msra.mxu0 0
    %547 = vmatprep.subr.bf16.mxu0 0
    %548 = vmatpush1.bf16.msra.mxu0 0
    %549 = vmatprep.mubr.bf16.mxu0 0
    %550 = vmatmul.mubr.bf16.gmra.mrb[0].mxu0 %v515
    %v551 = vpop.f32.mrb[0].mxu0
    %v552 = vadd.f32 %v501, %v551
    %v553 = vpop.f32.mrb[0].mxu0
    %v554 = vpop.f32.mrb[0].mxu0
    %v555 = vpop.f32.mrb[0].mxu0
    %556 = vdwg.mxu0
    %vm557 = vcmp.gt.f32.partialorder %v552, 0.0
    %v558 = vmul.f32 %v552, 0.1
    %v559 = vsel %vm557, %v552, %v558
    %v560 = vld [vmem:[#allocation7 + $0xb] sm:$0x1]
    %v561 = vld [vmem:[#allocation7 + $0xc] sm:$0x1]
    %v562 = vsel %vm140, %v559, 0.0
    %v563 = vrot.slane %v562, 4
    %v564 = vadd.f32 %v562, %v563
    %v565 = vrot.slane %v564, 2
    %v566 = vadd.f32 %v564, %v565
    %v567 = vrot.slane %v566, 1
    %v568 = vadd.f32 %v566, %v567
    %v569 = vmul.f32 %v568, %v196
    %v570 = vmul.f32 %v559, %v559
    %v571 = vsel %vm140, %v570, 0.0
    %v572 = vrot.slane %v571, 4
    %v573 = vadd.f32 %v571, %v572
    %v574 = vrot.slane %v573, 2
    %v575 = vadd.f32 %v573, %v574
    %v576 = vrot.slane %v575, 1
    %v577 = vadd.f32 %v575, %v576
    %v578 = vmul.f32 %v577, %v196
    %v579 = vmul.f32 %v569, %v569
    %v580 = vsub.f32 %v578, %v579
    %v581 = vmax.f32 %v580, 0.0
    %v582 = vadd.f32 %v581, 1e-05
    %v583 = vrsqrt.pop %v582
    %v584 = vmul.f32 %v583, %v560
    %v585 = vsub.f32 %v559, %v569
    %v586 = vlaneseq
    %v587 = vshrl.u32 %v586, 7
    %v588 = vsub.s32 0, %v587
    %v589 = vrot.slane %v584, %v588
    %v590 = vmul.f32 %v585, %v589
    %v591 = vlaneseq
    %v592 = vshrl.u32 %v591, 7
    %v593 = vsub.s32 0, %v592
    %v594 = vrot.slane %v561, %v593
    %v595 = vadd.f32 %v590, %v594
    %s596 = scalar_lea.vmem [#allocation5], 96
    %v597 = vld [vmem:[%s596] sm:$0xf]
    %v598 = vld [vmem:[%s596 + $0x4] sm:$0xf]
    %v599 = vld [vmem:[%s596 + $0x8] sm:$0xf]
    %v600 = vld [vmem:[%s596 + $0xc] sm:$0xf]
    %v601 = vpack.c.bf16 %v595, %v595
    %v606 = vunpack.c.l.b16 %v597
    %v607 = vunpack.c.l.b16 %v598
    %v608 = vunpack.c.l.b16 %v599
    %v609 = vunpack.c.l.b16 %v600
    %v610 = vpack.c.b16 %v607, %v606
    %v611 = vpack.c.b16 %v609, %v608
    %v615 = vsel %vm140, %v601, 0
    %617 = vmatprep.subr.bf16.mxu0 0
    %618 = vmatpush1.bf16.msra.mxu0 %v610
    %619 = vmatprep.subr.bf16.mxu0 0
    %620 = vmatpush1.bf16.msra.mxu0 %v611
    %621 = vmatprep.subr.bf16.mxu0 0
    %622 = vmatpush1.bf16.msra.mxu0 0
    %623 = vmatprep.subr.bf16.mxu0 0
    %624 = vmatpush1.bf16.msra.mxu0 0
    %625 = vmatprep.subr.bf16.mxu0 0
    %626 = vmatpush1.bf16.msra.mxu0 0
    %627 = vmatprep.subr.bf16.mxu0 0
    %628 = vmatpush1.bf16.msra.mxu0 0
    %629 = vmatprep.subr.bf16.mxu0 0
    %630 = vmatpush1.bf16.msra.mxu0 0
    %631 = vmatprep.subr.bf16.mxu0 0
    %632 = vmatpush1.bf16.msra.mxu0 0
    %633 = vmatprep.subr.bf16.mxu0 0
    %634 = vmatpush1.bf16.msra.mxu0 0
    %635 = vmatprep.subr.bf16.mxu0 0
    %636 = vmatpush1.bf16.msra.mxu0 0
    %637 = vmatprep.subr.bf16.mxu0 0
    %638 = vmatpush1.bf16.msra.mxu0 0
    %639 = vmatprep.subr.bf16.mxu0 0
    %640 = vmatpush1.bf16.msra.mxu0 0
    %641 = vmatprep.subr.bf16.mxu0 0
    %642 = vmatpush1.bf16.msra.mxu0 0
    %643 = vmatprep.subr.bf16.mxu0 0
    %644 = vmatpush1.bf16.msra.mxu0 0
    %645 = vmatprep.subr.bf16.mxu0 0
    %646 = vmatpush1.bf16.msra.mxu0 0
    %647 = vmatprep.subr.bf16.mxu0 0
    %648 = vmatpush1.bf16.msra.mxu0 0
    %649 = vmatprep.mubr.bf16.mxu0 0
    %650 = vmatmul.mubr.bf16.gmra.mrb[0].mxu0 %v615
    %v651 = vpop.f32.mrb[0].mxu0
    %v652 = vadd.f32 0.0, %v651
    %v653 = vpop.f32.mrb[0].mxu0
    %v654 = vpop.f32.mrb[0].mxu0
    %v655 = vpop.f32.mrb[0].mxu0
    %656 = vdwg.mxu0
    %vm657 = vcmask 64520
    %v658 = vsel %vm657, %v652, -inf
    %659 = vmax.xlane.f32.xlu0 %v658
    %v660 = vpop.xlane.xlu0 %659
    %v661 = vsub.f32 %v652, %v660
    %v662 = vmul.f32 %v661, 1.442695
    %v663 = vpow.pop %v662
    %665 = vrot.lane.b32.xlu0 %v663, 127
    %v666 = vpop.permute.xlu0 %665
    %vm668 = vcmask 56320
    %v669 = vsel %vm668, %v666, 0.0
    %670 = vadd.xlane.f32.xlu0 %v669
    %v671 = vpop.xlane.xlu0 %670
    %v672 = vrcp.pop %v671
    %v673 = vmul.f32 %v663, %v672
    %675 = vrot.lane.b32.xlu0 %v652, 24
    %v676 = vpop.permute.xlu0 %675
    %679 = vrot.lane.b32.xlu0 %v673, 24
    %v680 = vpop.permute.xlu0 %679
    %vm682 = vcmask 195584
    %v683 = vsel %vm682, %v385, %v676
    %vm684 = vcmask 203776
    %v685 = vsel %vm684, %v683, %v680
    %686 = vst.msk [vmem:[#allocation8] sm:$0xff] %vm140, %v685
    // Predicated region
    $region26: #{tpu_custom_call.1} parent=1 // pred_check
      _
    $region27: #{tpu_custom_call.1} parent=1 // pred_check_branch
      %688 = sbr.rel (0) target = $region29
    $region28: #{tpu_custom_call.1} parent=1 // pred_region
      %s690 = ssub.s32 128, 128
      %691 = vsyncadd [#allocation4], %s690
      %s693 = sshll.u32 [#allocation8], 4
      %s694 = int_to_ptr.vmem [resolvable:$true] %s693
      %696 = dma.vmem_to_hbm [thread:$0]  %s694, 128, %s3, [#allocation4]
    $region29: #{tpu_custom_call.1} parent=1 // pred_fallthru
      _
    // Predicated region
    $region30: #{tpu_custom_call.1} parent=1 // pred_check
      _
    $region31: #{tpu_custom_call.1} parent=1 // pred_check_branch
      %698 = sbr.rel (0) target = $region33
    $region32: #{tpu_custom_call.1} parent=1 // pred_region
      %699 = dma.done [#allocation4], 128
    $region33: #{tpu_custom_call.1} parent=1 // pred_fallthru
      _
    %700 = vsyncpa [#allocation3], 1
    %701 = vsyncpa [#allocation6], 1
    %702 = vsyncpa [#allocation4], 1

</llo_original>
